<compile_context>
chip_gen: v7x
topology: tpu7x:2x2x1
jax: 0.10.0
libtpu: 0.0.40
codegen_flags: <defaults>
</compile_context>

<pallas_src>
import functools

import jax
import jax.numpy as jnp
from jax.experimental import pallas as pl
from jax.experimental.pallas import tpu as pltpu


def lstm_kernel(x_ref, w_ref, out_ref, *, hidden, out_dim, gate_pitch):
    """Fused LSTM + Linear forward.

    x_ref:   (B, T) f32   -- batch-first input with the size-1 feature dim
                             squeezed away (input_size == 1).
    w_ref:   (H + 3 + O, 4*GP) f32 packed parameter slab, rows:
               [0:H)        Wh   (gate g in lanes [g*GP, g*GP+H))
               [H:H+1)      Wx   (single row, same lane layout; I == 1)
               [H+1:H+2)    b    (b_ih + b_hh, same lane layout)
               [H+2:H+2+O)  Wfc  (row o = fc weights for output o, lanes [0,H))
               [H+2+O]      bfc  (bfc[o] at lane o)
    out_ref: (B, O) f32
    Gate order inside the lane blocks is PyTorch's [i, f, g, o].
    """
    B, T = x_ref.shape
    H, O, GP = hidden, out_dim, gate_pitch

    # Static row offsets in the packed slab (assumes input_size == 1).
    R_WH, R_WX, R_B = 0, H, H + 1
    R_FCW, R_FCB = H + 2, H + 2 + O

    # Loop-invariant parameter loads (one-time, off the recurrence chain).
    wh = w_ref[R_WH:R_WH + H, :]       # (H, 4*GP)
    wx = w_ref[R_WX:R_WX + 1, :]       # (1, 4*GP)
    b = w_ref[R_B:R_B + 1, :]          # (1, 4*GP)
    xv = x_ref[...]                    # (B, T) -- one vreg-sized load

    h = jnp.zeros((B, H), jnp.float32)
    c = jnp.zeros((B, H), jnp.float32)

    # Fully unrolled recurrence (T is small and static). The input
    # projection is a pure VPU broadcast-multiply (I == 1 -> outer product)
    # with no dependence on h/c, so the scheduler can hoist it off the
    # serial chain; only the (B,H)@(H,4*GP) matmul is on the chain.
    for t in range(T):
        xw_t = xv[:, t:t + 1] * wx + b                                # VPU only
        gates = xw_t + jnp.dot(h, wh, preferred_element_type=jnp.float32)
        # Lane-aligned gate slices: each starts on a 128-lane boundary, so
        # the (B, H) results occupy lanes [0, H) like h/c -- no XLU moves.
        i_g = jax.nn.sigmoid(gates[:, 0 * GP:0 * GP + H])
        f_g = jax.nn.sigmoid(gates[:, 1 * GP:1 * GP + H])
        g_g = jnp.tanh(gates[:, 2 * GP:2 * GP + H])
        o_g = jax.nn.sigmoid(gates[:, 3 * GP:3 * GP + H])
        c = f_g * c + i_g * g_g
        h = o_g * jnp.tanh(c)

    # Epilogue fc: O is tiny -> VPU multiply + lane reduction instead of a
    # tail MXU push/pop. Masked (B, O<128) store accepted at this size.
    cols = []
    for o in range(O):
        w_row = w_ref[R_FCW + o:R_FCW + o + 1, 0:H]                   # (1, H)
        bias = w_ref[R_FCB:R_FCB + 1, o:o + 1]                        # (1, 1)
        cols.append(jnp.sum(h * w_row, axis=-1, keepdims=True) + bias)
    out_ref[...] = cols[0] if O == 1 else jnp.concatenate(cols, axis=-1)


def simple_lstm_forward(x, params, *, hidden_size, output_size, gate_pitch=128):
    """x: (B, T, 1) batch_first float32. Returns (B, output_size)."""
    B, T, I = x.shape
    assert I == 1, "broadcast input projection assumes input_size == 1"
    x2 = x.reshape(B, T)  # free squeeze; no wrapper transpose needed

    kernel = functools.partial(lstm_kernel, hidden=hidden_size,
                               out_dim=output_size, gate_pitch=gate_pitch)
    vmem = pl.BlockSpec(memory_space=pltpu.MemorySpace.VMEM)
    return pl.pallas_call(
        kernel,
        out_shape=jax.ShapeDtypeStruct((B, output_size), jnp.float32),
        in_specs=[vmem, vmem],
        out_specs=vmem,
    )(x2, params["w"])


def init_params(key, input_size, hidden_size, output_size, gate_pitch=128):
    """PyTorch-shaped LSTM/Linear params, packed into one lane-padded slab.

    Row layout of the returned slab matches lstm_kernel's docstring. The raw
    PyTorch-layout tensors are returned under "raw" for the reference.
    """
    H, I, O, GP = hidden_size, input_size, output_size, gate_pitch
    assert I == 1 and H <= GP and O <= GP
    k = jax.random.split(key, 6)
    stdv = 1.0 / float(H) ** 0.5
    w_ih = jax.random.uniform(k[0], (4 * H, I), jnp.float32, -stdv, stdv)
    w_hh = jax.random.uniform(k[1], (4 * H, H), jnp.float32, -stdv, stdv)
    b_ih = jax.random.uniform(k[2], (4 * H,), jnp.float32, -stdv, stdv)
    b_hh = jax.random.uniform(k[3], (4 * H,), jnp.float32, -stdv, stdv)
    w_fc = jax.random.uniform(k[4], (O, H), jnp.float32, -stdv, stdv)
    b_fc = jax.random.uniform(k[5], (O,), jnp.float32, -stdv, stdv)

    def lane_pad(w):  # (4H, D) -> (D, 4*GP): gate g in lanes [g*GP, g*GP+H)
        out = jnp.zeros((w.shape[1], 4 * GP), jnp.float32)
        for g in range(4):
            out = out.at[:, g * GP:g * GP + H].set(w[g * H:(g + 1) * H].T)
        return out

    rows = H + I + 1 + O + 1
    W = jnp.zeros((rows, 4 * GP), jnp.float32)
    W = W.at[0:H].set(lane_pad(w_hh))                                 # Wh
    W = W.at[H:H + I].set(lane_pad(w_ih))                             # Wx
    W = W.at[H + I:H + I + 1].set(lane_pad((b_ih + b_hh)[:, None]))   # bias
    W = W.at[H + I + 1:H + I + 1 + O, 0:H].set(w_fc)                  # Wfc
    W = W.at[H + I + 1 + O, 0:O].set(b_fc)                            # bfc
    raw = dict(w_ih=w_ih, w_hh=w_hh, b_ih=b_ih, b_hh=b_hh, w_fc=w_fc, b_fc=b_fc)
    return dict(w=W, raw=raw)


def simple_lstm_ref(x, raw):
    """Pure-JAX reference with PyTorch nn.LSTM semantics (gate order i,f,g,o)."""
    B, T, _ = x.shape
    H = raw["w_hh"].shape[1]
    b = raw["b_ih"] + raw["b_hh"]
    h = jnp.zeros((B, H), jnp.float32)
    c = jnp.zeros((B, H), jnp.float32)
    for t in range(T):
        gates = x[:, t, :] @ raw["w_ih"].T + h @ raw["w_hh"].T + b
        i_g = jax.nn.sigmoid(gates[:, 0:H])
        f_g = jax.nn.sigmoid(gates[:, H:2 * H])
        g_g = jnp.tanh(gates[:, 2 * H:3 * H])
        o_g = jax.nn.sigmoid(gates[:, 3 * H:4 * H])
        c = f_g * c + i_g * g_g
        h = o_g * jnp.tanh(c)
    return h @ raw["w_fc"].T + raw["b_fc"]


if __name__ == "__main__":
    hidden_size = 10
    input_size = 1
    output_size = 1
    seq_length = 5
    batch = 10

    key = jax.random.PRNGKey(0)
    key_x, key_p = jax.random.split(key)
    x = jax.random.normal(key_x, (batch, seq_length, input_size), jnp.float32)
    params = init_params(key_p, input_size, hidden_size, output_size)

    out = simple_lstm_forward(x, params, hidden_size=hidden_size,
                              output_size=output_size)
    out = jax.block_until_ready(out)

    ref = simple_lstm_ref(x, params["raw"])
    assert out.shape == (batch, output_size)
    assert jnp.allclose(out, ref, atol=1e-5, rtol=1e-5)
    print("KERNEL_OK")
</pallas_src>

<mosaic_0001>
module attributes {stable_mosaic.version = 11 : i64} {
  func.func @lstm_kernel(%arg0: memref<10x5xf32, #tpu.memory_space<vmem>>, %arg1: memref<14x512xf32, #tpu.memory_space<vmem>>, %arg2: memref<10x1xf32, #tpu.memory_space<vmem>>) attributes {dimension_semantics = [], scalar_prefetch = 0 : i64, scratch_operands = 0 : i64, tpu.core_type = #tpu.core_type<tc>} {
    %c0 = arith.constant 0 : index
    %c0_0 = arith.constant 0 : index
    %0 = vector.load %arg1[%c0, %c0_0] : memref<14x512xf32, #tpu.memory_space<vmem>>, vector<10x512xf32>
    %c10 = arith.constant 10 : index
    %c0_1 = arith.constant 0 : index
    %1 = vector.load %arg1[%c10, %c0_1] : memref<14x512xf32, #tpu.memory_space<vmem>>, vector<1x512xf32>
    %c11 = arith.constant 11 : index
    %c0_2 = arith.constant 0 : index
    %2 = vector.load %arg1[%c11, %c0_2] : memref<14x512xf32, #tpu.memory_space<vmem>>, vector<1x512xf32>
    %c0_3 = arith.constant 0 : index
    %c0_4 = arith.constant 0 : index
    %3 = vector.load %arg0[%c0_3, %c0_4] : memref<10x5xf32, #tpu.memory_space<vmem>>, vector<10x5xf32>
    %cst = arith.constant 0.000000e+00 : f32
    %4 = vector.broadcast %cst : f32 to vector<10x10xf32>
    %cst_5 = arith.constant 0.000000e+00 : f32
    %5 = vector.broadcast %cst_5 : f32 to vector<10x10xf32>
    %6 = vector.extract_strided_slice %3 {offsets = [0, 0], sizes = [10, 1], strides = [1, 1]} : vector<10x5xf32> to vector<10x1xf32>
    %7 = vector.broadcast %6 : vector<10x1xf32> to vector<10x512xf32>
    %8 = vector.broadcast %1 : vector<1x512xf32> to vector<10x512xf32>
    %9 = arith.mulf %7, %8 : vector<10x512xf32>
    %10 = vector.broadcast %2 : vector<1x512xf32> to vector<10x512xf32>
    %11 = arith.addf %9, %10 : vector<10x512xf32>
    %cst_6 = arith.constant dense<0.000000e+00> : vector<10x512xf32>
    %12 = tpu.matmul %4, %0, %cst_6 {dimension_numbers = #tpu.dot_dimension_numbers<[1], [0], [0], [1], [0, 0, 1, 1], [], []>} : vector<10x10xf32>, vector<10x512xf32>, vector<10x512xf32> -> vector<10x512xf32>
    %13 = arith.addf %11, %12 : vector<10x512xf32>
    %14 = vector.extract_strided_slice %13 {offsets = [0, 0], sizes = [10, 10], strides = [1, 1]} : vector<10x512xf32> to vector<10x10xf32>
    %15 = arith.negf %14 : vector<10x10xf32>
    %16 = math.exp %15 : vector<10x10xf32>
    %cst_7 = arith.constant 1.000000e+00 : f32
    %17 = vector.broadcast %cst_7 : f32 to vector<10x10xf32>
    %18 = arith.addf %17, %16 : vector<10x10xf32>
    %19 = arith.divf %17, %18 : vector<10x10xf32>
    %20 = vector.extract_strided_slice %13 {offsets = [0, 128], sizes = [10, 10], strides = [1, 1]} : vector<10x512xf32> to vector<10x10xf32>
    %21 = arith.negf %20 : vector<10x10xf32>
    %22 = math.exp %21 : vector<10x10xf32>
    %cst_8 = arith.constant 1.000000e+00 : f32
    %23 = vector.broadcast %cst_8 : f32 to vector<10x10xf32>
    %24 = arith.addf %23, %22 : vector<10x10xf32>
    %25 = arith.divf %23, %24 : vector<10x10xf32>
    %26 = vector.extract_strided_slice %13 {offsets = [0, 256], sizes = [10, 10], strides = [1, 1]} : vector<10x512xf32> to vector<10x10xf32>
    %27 = math.tanh %26 : vector<10x10xf32>
    %28 = vector.extract_strided_slice %13 {offsets = [0, 384], sizes = [10, 10], strides = [1, 1]} : vector<10x512xf32> to vector<10x10xf32>
    %29 = arith.negf %28 : vector<10x10xf32>
    %30 = math.exp %29 : vector<10x10xf32>
    %cst_9 = arith.constant 1.000000e+00 : f32
    %31 = vector.broadcast %cst_9 : f32 to vector<10x10xf32>
    %32 = arith.addf %31, %30 : vector<10x10xf32>
    %33 = arith.divf %31, %32 : vector<10x10xf32>
    %34 = arith.mulf %25, %5 : vector<10x10xf32>
    %35 = arith.mulf %19, %27 : vector<10x10xf32>
    %36 = arith.addf %34, %35 : vector<10x10xf32>
    %37 = math.tanh %36 : vector<10x10xf32>
    %38 = arith.mulf %33, %37 : vector<10x10xf32>
    %39 = vector.extract_strided_slice %3 {offsets = [0, 1], sizes = [10, 1], strides = [1, 1]} : vector<10x5xf32> to vector<10x1xf32>
    %40 = vector.broadcast %39 : vector<10x1xf32> to vector<10x512xf32>
    %41 = vector.broadcast %1 : vector<1x512xf32> to vector<10x512xf32>
    %42 = arith.mulf %40, %41 : vector<10x512xf32>
    %43 = vector.broadcast %2 : vector<1x512xf32> to vector<10x512xf32>
    %44 = arith.addf %42, %43 : vector<10x512xf32>
    %cst_10 = arith.constant dense<0.000000e+00> : vector<10x512xf32>
    %45 = tpu.matmul %38, %0, %cst_10 {dimension_numbers = #tpu.dot_dimension_numbers<[1], [0], [0], [1], [0, 0, 1, 1], [], []>} : vector<10x10xf32>, vector<10x512xf32>, vector<10x512xf32> -> vector<10x512xf32>
    %46 = arith.addf %44, %45 : vector<10x512xf32>
    %47 = vector.extract_strided_slice %46 {offsets = [0, 0], sizes = [10, 10], strides = [1, 1]} : vector<10x512xf32> to vector<10x10xf32>
    %48 = arith.negf %47 : vector<10x10xf32>
    %49 = math.exp %48 : vector<10x10xf32>
    %cst_11 = arith.constant 1.000000e+00 : f32
    %50 = vector.broadcast %cst_11 : f32 to vector<10x10xf32>
    %51 = arith.addf %50, %49 : vector<10x10xf32>
    %52 = arith.divf %50, %51 : vector<10x10xf32>
    %53 = vector.extract_strided_slice %46 {offsets = [0, 128], sizes = [10, 10], strides = [1, 1]} : vector<10x512xf32> to vector<10x10xf32>
    %54 = arith.negf %53 : vector<10x10xf32>
    %55 = math.exp %54 : vector<10x10xf32>
    %cst_12 = arith.constant 1.000000e+00 : f32
    %56 = vector.broadcast %cst_12 : f32 to vector<10x10xf32>
    %57 = arith.addf %56, %55 : vector<10x10xf32>
    %58 = arith.divf %56, %57 : vector<10x10xf32>
    %59 = vector.extract_strided_slice %46 {offsets = [0, 256], sizes = [10, 10], strides = [1, 1]} : vector<10x512xf32> to vector<10x10xf32>
    %60 = math.tanh %59 : vector<10x10xf32>
    %61 = vector.extract_strided_slice %46 {offsets = [0, 384], sizes = [10, 10], strides = [1, 1]} : vector<10x512xf32> to vector<10x10xf32>
    %62 = arith.negf %61 : vector<10x10xf32>
    %63 = math.exp %62 : vector<10x10xf32>
    %cst_13 = arith.constant 1.000000e+00 : f32
    %64 = vector.broadcast %cst_13 : f32 to vector<10x10xf32>
    %65 = arith.addf %64, %63 : vector<10x10xf32>
    %66 = arith.divf %64, %65 : vector<10x10xf32>
    %67 = arith.mulf %58, %36 : vector<10x10xf32>
    %68 = arith.mulf %52, %60 : vector<10x10xf32>
    %69 = arith.addf %67, %68 : vector<10x10xf32>
    %70 = math.tanh %69 : vector<10x10xf32>
    %71 = arith.mulf %66, %70 : vector<10x10xf32>
    %72 = vector.extract_strided_slice %3 {offsets = [0, 2], sizes = [10, 1], strides = [1, 1]} : vector<10x5xf32> to vector<10x1xf32>
    %73 = vector.broadcast %72 : vector<10x1xf32> to vector<10x512xf32>
    %74 = vector.broadcast %1 : vector<1x512xf32> to vector<10x512xf32>
    %75 = arith.mulf %73, %74 : vector<10x512xf32>
    %76 = vector.broadcast %2 : vector<1x512xf32> to vector<10x512xf32>
    %77 = arith.addf %75, %76 : vector<10x512xf32>
    %cst_14 = arith.constant dense<0.000000e+00> : vector<10x512xf32>
    %78 = tpu.matmul %71, %0, %cst_14 {dimension_numbers = #tpu.dot_dimension_numbers<[1], [0], [0], [1], [0, 0, 1, 1], [], []>} : vector<10x10xf32>, vector<10x512xf32>, vector<10x512xf32> -> vector<10x512xf32>
    %79 = arith.addf %77, %78 : vector<10x512xf32>
    %80 = vector.extract_strided_slice %79 {offsets = [0, 0], sizes = [10, 10], strides = [1, 1]} : vector<10x512xf32> to vector<10x10xf32>
    %81 = arith.negf %80 : vector<10x10xf32>
    %82 = math.exp %81 : vector<10x10xf32>
    %cst_15 = arith.constant 1.000000e+00 : f32
    %83 = vector.broadcast %cst_15 : f32 to vector<10x10xf32>
    %84 = arith.addf %83, %82 : vector<10x10xf32>
    %85 = arith.divf %83, %84 : vector<10x10xf32>
    %86 = vector.extract_strided_slice %79 {offsets = [0, 128], sizes = [10, 10], strides = [1, 1]} : vector<10x512xf32> to vector<10x10xf32>
    %87 = arith.negf %86 : vector<10x10xf32>
    %88 = math.exp %87 : vector<10x10xf32>
    %cst_16 = arith.constant 1.000000e+00 : f32
    %89 = vector.broadcast %cst_16 : f32 to vector<10x10xf32>
    %90 = arith.addf %89, %88 : vector<10x10xf32>
    %91 = arith.divf %89, %90 : vector<10x10xf32>
    %92 = vector.extract_strided_slice %79 {offsets = [0, 256], sizes = [10, 10], strides = [1, 1]} : vector<10x512xf32> to vector<10x10xf32>
    %93 = math.tanh %92 : vector<10x10xf32>
    %94 = vector.extract_strided_slice %79 {offsets = [0, 384], sizes = [10, 10], strides = [1, 1]} : vector<10x512xf32> to vector<10x10xf32>
    %95 = arith.negf %94 : vector<10x10xf32>
    %96 = math.exp %95 : vector<10x10xf32>
    %cst_17 = arith.constant 1.000000e+00 : f32
    %97 = vector.broadcast %cst_17 : f32 to vector<10x10xf32>
    %98 = arith.addf %97, %96 : vector<10x10xf32>
    %99 = arith.divf %97, %98 : vector<10x10xf32>
    %100 = arith.mulf %91, %69 : vector<10x10xf32>
    %101 = arith.mulf %85, %93 : vector<10x10xf32>
    %102 = arith.addf %100, %101 : vector<10x10xf32>
    %103 = math.tanh %102 : vector<10x10xf32>
    %104 = arith.mulf %99, %103 : vector<10x10xf32>
    %105 = vector.extract_strided_slice %3 {offsets = [0, 3], sizes = [10, 1], strides = [1, 1]} : vector<10x5xf32> to vector<10x1xf32>
    %106 = vector.broadcast %105 : vector<10x1xf32> to vector<10x512xf32>
    %107 = vector.broadcast %1 : vector<1x512xf32> to vector<10x512xf32>
    %108 = arith.mulf %106, %107 : vector<10x512xf32>
    %109 = vector.broadcast %2 : vector<1x512xf32> to vector<10x512xf32>
    %110 = arith.addf %108, %109 : vector<10x512xf32>
    %cst_18 = arith.constant dense<0.000000e+00> : vector<10x512xf32>
    %111 = tpu.matmul %104, %0, %cst_18 {dimension_numbers = #tpu.dot_dimension_numbers<[1], [0], [0], [1], [0, 0, 1, 1], [], []>} : vector<10x10xf32>, vector<10x512xf32>, vector<10x512xf32> -> vector<10x512xf32>
    %112 = arith.addf %110, %111 : vector<10x512xf32>
    %113 = vector.extract_strided_slice %112 {offsets = [0, 0], sizes = [10, 10], strides = [1, 1]} : vector<10x512xf32> to vector<10x10xf32>
    %114 = arith.negf %113 : vector<10x10xf32>
    %115 = math.exp %114 : vector<10x10xf32>
    %cst_19 = arith.constant 1.000000e+00 : f32
    %116 = vector.broadcast %cst_19 : f32 to vector<10x10xf32>
    %117 = arith.addf %116, %115 : vector<10x10xf32>
    %118 = arith.divf %116, %117 : vector<10x10xf32>
    %119 = vector.extract_strided_slice %112 {offsets = [0, 128], sizes = [10, 10], strides = [1, 1]} : vector<10x512xf32> to vector<10x10xf32>
    %120 = arith.negf %119 : vector<10x10xf32>
    %121 = math.exp %120 : vector<10x10xf32>
    %cst_20 = arith.constant 1.000000e+00 : f32
    %122 = vector.broadcast %cst_20 : f32 to vector<10x10xf32>
    %123 = arith.addf %122, %121 : vector<10x10xf32>
    %124 = arith.divf %122, %123 : vector<10x10xf32>
    %125 = vector.extract_strided_slice %112 {offsets = [0, 256], sizes = [10, 10], strides = [1, 1]} : vector<10x512xf32> to vector<10x10xf32>
    %126 = math.tanh %125 : vector<10x10xf32>
    %127 = vector.extract_strided_slice %112 {offsets = [0, 384], sizes = [10, 10], strides = [1, 1]} : vector<10x512xf32> to vector<10x10xf32>
    %128 = arith.negf %127 : vector<10x10xf32>
    %129 = math.exp %128 : vector<10x10xf32>
    %cst_21 = arith.constant 1.000000e+00 : f32
    %130 = vector.broadcast %cst_21 : f32 to vector<10x10xf32>
    %131 = arith.addf %130, %129 : vector<10x10xf32>
    %132 = arith.divf %130, %131 : vector<10x10xf32>
    %133 = arith.mulf %124, %102 : vector<10x10xf32>
    %134 = arith.mulf %118, %126 : vector<10x10xf32>
    %135 = arith.addf %133, %134 : vector<10x10xf32>
    %136 = math.tanh %135 : vector<10x10xf32>
    %137 = arith.mulf %132, %136 : vector<10x10xf32>
    %138 = vector.extract_strided_slice %3 {offsets = [0, 4], sizes = [10, 1], strides = [1, 1]} : vector<10x5xf32> to vector<10x1xf32>
    %139 = vector.broadcast %138 : vector<10x1xf32> to vector<10x512xf32>
    %140 = vector.broadcast %1 : vector<1x512xf32> to vector<10x512xf32>
    %141 = arith.mulf %139, %140 : vector<10x512xf32>
    %142 = vector.broadcast %2 : vector<1x512xf32> to vector<10x512xf32>
    %143 = arith.addf %141, %142 : vector<10x512xf32>
    %cst_22 = arith.constant dense<0.000000e+00> : vector<10x512xf32>
    %144 = tpu.matmul %137, %0, %cst_22 {dimension_numbers = #tpu.dot_dimension_numbers<[1], [0], [0], [1], [0, 0, 1, 1], [], []>} : vector<10x10xf32>, vector<10x512xf32>, vector<10x512xf32> -> vector<10x512xf32>
    %145 = arith.addf %143, %144 : vector<10x512xf32>
    %146 = vector.extract_strided_slice %145 {offsets = [0, 0], sizes = [10, 10], strides = [1, 1]} : vector<10x512xf32> to vector<10x10xf32>
    %147 = arith.negf %146 : vector<10x10xf32>
    %148 = math.exp %147 : vector<10x10xf32>
    %cst_23 = arith.constant 1.000000e+00 : f32
    %149 = vector.broadcast %cst_23 : f32 to vector<10x10xf32>
    %150 = arith.addf %149, %148 : vector<10x10xf32>
    %151 = arith.divf %149, %150 : vector<10x10xf32>
    %152 = vector.extract_strided_slice %145 {offsets = [0, 128], sizes = [10, 10], strides = [1, 1]} : vector<10x512xf32> to vector<10x10xf32>
    %153 = arith.negf %152 : vector<10x10xf32>
    %154 = math.exp %153 : vector<10x10xf32>
    %cst_24 = arith.constant 1.000000e+00 : f32
    %155 = vector.broadcast %cst_24 : f32 to vector<10x10xf32>
    %156 = arith.addf %155, %154 : vector<10x10xf32>
    %157 = arith.divf %155, %156 : vector<10x10xf32>
    %158 = vector.extract_strided_slice %145 {offsets = [0, 256], sizes = [10, 10], strides = [1, 1]} : vector<10x512xf32> to vector<10x10xf32>
    %159 = math.tanh %158 : vector<10x10xf32>
    %160 = vector.extract_strided_slice %145 {offsets = [0, 384], sizes = [10, 10], strides = [1, 1]} : vector<10x512xf32> to vector<10x10xf32>
    %161 = arith.negf %160 : vector<10x10xf32>
    %162 = math.exp %161 : vector<10x10xf32>
    %cst_25 = arith.constant 1.000000e+00 : f32
    %163 = vector.broadcast %cst_25 : f32 to vector<10x10xf32>
    %164 = arith.addf %163, %162 : vector<10x10xf32>
    %165 = arith.divf %163, %164 : vector<10x10xf32>
    %166 = arith.mulf %157, %135 : vector<10x10xf32>
    %167 = arith.mulf %151, %159 : vector<10x10xf32>
    %168 = arith.addf %166, %167 : vector<10x10xf32>
    %169 = math.tanh %168 : vector<10x10xf32>
    %170 = arith.mulf %165, %169 : vector<10x10xf32>
    %c12 = arith.constant 12 : index
    %c0_26 = arith.constant 0 : index
    %171 = vector.load %arg1[%c12, %c0_26] : memref<14x512xf32, #tpu.memory_space<vmem>>, vector<1x10xf32>
    %c13 = arith.constant 13 : index
    %c0_27 = arith.constant 0 : index
    %172 = vector.load %arg1[%c13, %c0_27] : memref<14x512xf32, #tpu.memory_space<vmem>>, vector<1x1xf32>
    %173 = vector.broadcast %171 : vector<1x10xf32> to vector<10x10xf32>
    %174 = arith.mulf %170, %173 : vector<10x10xf32>
    %cst_28 = arith.constant dense<0.000000e+00> : vector<10xf32>
    %175 = vector.multi_reduction <add>, %174, %cst_28 [1] : vector<10x10xf32> to vector<10xf32>
    %176 = vector.shape_cast %175 : vector<10xf32> to vector<10x1xf32>
    %177 = vector.broadcast %172 : vector<1x1xf32> to vector<10x1xf32>
    %178 = arith.addf %176, %177 : vector<10x1xf32>
    %c0_29 = arith.constant 0 : index
    %c0_30 = arith.constant 0 : index
    %179 = vector.load %arg2[%c0_29, %c0_30] : memref<10x1xf32, #tpu.memory_space<vmem>>, vector<10x1xf32>
    tpu.vector_store %arg2[%c0_29, %c0_30], %178 {strides = array<i32>} : memref<10x1xf32, #tpu.memory_space<vmem>>, vector<10x1xf32>,
    return
  }
}

</mosaic_0001>

<llo_original>
// kernel: tpu_custom_call.1
$region0: #{tpu_custom_call.1}
  #allocation0 [shape = 'u32[]', space=smem, size = 0x4, offset = 0x4, fixed_abs, tag = 'smem constant byte address 0x4 - core index']
  #allocation1 [shape = 'u32[144,128]{1,0:T(1,128)}', space=vmem, size = 0x12000, scoped, tag = 'internal scratch']
  %s0 = inlined_call_operand.vmem [shape: f32[10,5], index: 0, kind: input, shape index: {}]
  %s1 = inlined_call_operand.hbm [shape: f32[14,512], index: 1, kind: input, shape index: {}]
  %s2 = inlined_call_operand.vmem [shape: f32[10,1], index: 2, kind: output, shape index: {}]
  %s3 = sld [smem:[#allocation0]]
  $region22: #{tpu_custom_call.1} parent=0
    _
  %s5 = ssub.s32 1, %s3
  %s6 = scalar_select 0, %s5, %s3
  $region1: #{tpu_custom_call.1} parent=0
    #allocation2 [shape = 'u8[32768]{0}', space=vmem, size = 0x8000, scoped, tag = 'input window, operand 1, single buffered']
    #allocation3 [shape = 's32[1]{0}', space=sflag, size = 0x4, scoped, tag = 'scoped memory for tpu_custom_call.1']
    %7 = vsyncpa [#allocation3], 0
    // Predicated region
    $region2: #{tpu_custom_call.1} parent=1 // pred_check
      _
    $region3: #{tpu_custom_call.1} parent=1 // pred_check_branch
      %9 = sbr.rel (0) target = $region5
    $region4: #{tpu_custom_call.1} parent=1 // pred_region
      _
    $region5: #{tpu_custom_call.1} parent=1 // pred_fallthru
      _
    // Predicated region
    $region6: #{tpu_custom_call.1} parent=1 // pred_check
      _
    $region7: #{tpu_custom_call.1} parent=1 // pred_check_branch
      %11 = sbr.rel (0) target = $region9
    $region8: #{tpu_custom_call.1} parent=1 // pred_region
      %s13 = ssub.s32 1024, 1024
      %14 = vsyncadd [#allocation3], %s13
      %s15 = sshll.u32 [#allocation2], 4
      %s16 = int_to_ptr.vmem [resolvable:$true] %s15
      %21 = dma.hbm_to_vmem [thread:$0]  %s1, 1024, %s16, [#allocation3], 512, 512, 32
    $region9: #{tpu_custom_call.1} parent=1 // pred_fallthru
      _
    // Predicated region
    $region10: #{tpu_custom_call.1} parent=1 // pred_check
      _
    $region11: #{tpu_custom_call.1} parent=1 // pred_check_branch
      %23 = sbr.rel (0) target = $region13
    $region12: #{tpu_custom_call.1} parent=1 // pred_region
      %24 = dma.done [#allocation3], 1024
    $region13: #{tpu_custom_call.1} parent=1 // pred_fallthru
      _
    %v25 = vld [vmem:[#allocation2] sm:$0xff]
    %v26 = vld [vmem:[#allocation2 + $0x8] sm:$0xff]
    %v27 = vld [vmem:[#allocation2 + $0x10] sm:$0xff]
    %v28 = vld [vmem:[#allocation2 + $0x18] sm:$0xff]
    %v29 = vld [vmem:[#allocation2 + $0x20] sm:$0x3]
    %v30 = vld [vmem:[#allocation2 + $0x28] sm:$0x3]
    %v31 = vld [vmem:[#allocation2 + $0x30] sm:$0x3]
    %v32 = vld [vmem:[#allocation2 + $0x38] sm:$0x3]
    %s33 = scalar_lea.vmem [#allocation2], 34
    %v34 = vld [vmem:[%s33] ss:$8 sm:$0xf]
    %s35 = scalar_lea.vmem [#allocation2], 35
    %v36 = vld [vmem:[%s35] ss:$8 sm:$0xf]
    %v37 = vld [vmem:[%s0] sm:$0xff]
    %v38 = vld [vmem:[%s0 + $0x8] sm:$0x3]
    %40 = vset.pattern.permute.xlu0 0
    %41 = vperm.xlu0 %40, %v37
    %v42 = vpop.permute.xlu0 %41
    %45 = vset.pattern.permute.xlu0 0
    %46 = vperm.xlu0 %45, %v38
    %v47 = vpop.permute.xlu0 %46
    %v50 = vlaneseq
    %v51 = vshrl.u32 %v50, 7
    %v52 = vsub.s32 0, %v51
    %v53 = vrot.slane %v34, %v52
    %v54 = vlaneseq
    %v55 = vshrl.u32 %v54, 7
    %v56 = vsub.s32 1, %v55
    %v57 = vrot.slane %v34, %v56
    %v58 = vlaneseq
    %v59 = vshrl.u32 %v58, 7
    %v60 = vsub.s32 2, %v59
    %v61 = vrot.slane %v34, %v60
    %v62 = vlaneseq
    %v63 = vshrl.u32 %v62, 7
    %v64 = vsub.s32 3, %v63
    %v65 = vrot.slane %v34, %v64
    %v70 = vmul.f32 %v42, %v53
    %v71 = vmul.f32 %v42, %v57
    %v72 = vmul.f32 %v42, %v61
    %v73 = vmul.f32 %v42, %v65
    %v74 = vmul.f32 %v47, %v53
    %v75 = vmul.f32 %v47, %v57
    %v76 = vmul.f32 %v47, %v61
    %v77 = vmul.f32 %v47, %v65
    %v79 = vlaneseq
    %v80 = vshrl.u32 %v79, 7
    %v81 = vsub.s32 0, %v80
    %v82 = vrot.slane %v36, %v81
    %v83 = vlaneseq
    %v84 = vshrl.u32 %v83, 7
    %v85 = vsub.s32 1, %v84
    %v86 = vrot.slane %v36, %v85
    %v87 = vlaneseq
    %v88 = vshrl.u32 %v87, 7
    %v89 = vsub.s32 2, %v88
    %v90 = vrot.slane %v36, %v89
    %v91 = vlaneseq
    %v92 = vshrl.u32 %v91, 7
    %v93 = vsub.s32 3, %v92
    %v94 = vrot.slane %v36, %v93
    %v99 = vadd.f32 %v70, %v82
    %v100 = vadd.f32 %v71, %v86
    %v101 = vadd.f32 %v72, %v90
    %v102 = vadd.f32 %v73, %v94
    %v103 = vadd.f32 %v74, %v82
    %v104 = vadd.f32 %v75, %v86
    %v105 = vadd.f32 %v76, %v90
    %v106 = vadd.f32 %v77, %v94
    %vm107 = vcmask 80896
    %v109 = vsel %vm107, 0.0, 0
    %vm111 = vcmask 1041408
    %v113 = vsel %vm111, %v29, 0
    %v116 = vsel %vm111, %v30, 0
    %v119 = vsel %vm111, %v31, 0
    %v122 = vsel %vm111, %v32, 0
    %124 = vmatprep.subr.mxu0 %v26
    %125 = vmatpush1.msra.mxu0 %v25
    %126 = vmatprep.subr.mxu0 %v116
    %127 = vmatpush1.msra.mxu0 %v113
    %128 = vmatprep.subr.mxu0 0.0
    %129 = vmatpush1.msra.mxu0 0.0
    %130 = vmatprep.subr.mxu0 0.0
    %131 = vmatpush1.msra.mxu0 0.0
    %132 = vmatprep.subr.mxu0 0.0
    %133 = vmatpush1.msra.mxu0 0.0
    %134 = vmatprep.subr.mxu0 0.0
    %135 = vmatpush1.msra.mxu0 0.0
    %136 = vmatprep.subr.mxu0 0.0
    %137 = vmatpush1.msra.mxu0 0.0
    %138 = vmatprep.subr.mxu0 0.0
    %139 = vmatpush1.msra.mxu0 0.0
    %140 = vmatprep.subr.mxu0 0.0
    %141 = vmatpush1.msra.mxu0 0.0
    %142 = vmatprep.subr.mxu0 0.0
    %143 = vmatpush1.msra.mxu0 0.0
    %144 = vmatprep.subr.mxu0 0.0
    %145 = vmatpush1.msra.mxu0 0.0
    %146 = vmatprep.subr.mxu0 0.0
    %147 = vmatpush1.msra.mxu0 0.0
    %148 = vmatprep.subr.mxu0 0.0
    %149 = vmatpush1.msra.mxu0 0.0
    %150 = vmatprep.subr.mxu0 0.0
    %151 = vmatpush1.msra.mxu0 0.0
    %152 = vmatprep.subr.mxu0 0.0
    %153 = vmatpush1.msra.mxu0 0.0
    %154 = vmatprep.subr.mxu0 0.0
    %155 = vmatpush1.msra.mxu0 0.0
    %156 = vmatprep.subr.mxu0 0.0
    %157 = vmatpush1.msra.mxu0 0.0
    %158 = vmatprep.subr.mxu0 0.0
    %159 = vmatpush1.msra.mxu0 0.0
    %160 = vmatprep.subr.mxu0 0.0
    %161 = vmatpush1.msra.mxu0 0.0
    %162 = vmatprep.subr.mxu0 0.0
    %163 = vmatpush1.msra.mxu0 0.0
    %164 = vmatprep.subr.mxu0 0.0
    %165 = vmatpush1.msra.mxu0 0.0
    %166 = vmatprep.subr.mxu0 0.0
    %167 = vmatpush1.msra.mxu0 0.0
    %168 = vmatprep.subr.mxu0 0.0
    %169 = vmatpush1.msra.mxu0 0.0
    %170 = vmatprep.subr.mxu0 0.0
    %171 = vmatpush1.msra.mxu0 0.0
    %172 = vmatprep.subr.mxu0 0.0
    %173 = vmatpush1.msra.mxu0 0.0
    %174 = vmatprep.subr.mxu0 0.0
    %175 = vmatpush1.msra.mxu0 0.0
    %176 = vmatprep.subr.mxu0 0.0
    %177 = vmatpush1.msra.mxu0 0.0
    %178 = vmatprep.subr.mxu0 0.0
    %179 = vmatpush1.msra.mxu0 0.0
    %180 = vmatprep.subr.mxu0 0.0
    %181 = vmatpush1.msra.mxu0 0.0
    %182 = vmatprep.subr.mxu0 0.0
    %183 = vmatpush1.msra.mxu0 0.0
    %184 = vmatprep.subr.mxu0 0.0
    %185 = vmatpush1.msra.mxu0 0.0
    %186 = vmatprep.subr.mxu0 0.0
    %187 = vmatpush1.msra.mxu0 0.0
    %188 = vmatprep.mubr.f32.mxu0 0.0
    %189 = vmatmul.mubr.f32.gmra.mrb[0].mxu0 %v109
    %v190 = vpop.f32.mrb[0].mxu0
    %v191 = vadd.f32 0.0, %v190
    %v192 = vpop.f32.mrb[0].mxu0
    %v193 = vadd.f32 0.0, %v192
    %194 = vmatprep.mubr.f32.mxu0 0.0
    %195 = vmatmul.mubr.f32.gmra.mrb[0].mxu0 %v109
    %v196 = vpop.f32.mrb[0].mxu0
    %v197 = vadd.f32 0.0, %v196
    %v198 = vpop.f32.mrb[0].mxu0
    %v199 = vadd.f32 0.0, %v198
    %200 = vdwg.mxu0
    %201 = vmatprep.subr.mxu0 %v28
    %202 = vmatpush1.msra.mxu0 %v27
    %203 = vmatprep.subr.mxu0 %v122
    %204 = vmatpush1.msra.mxu0 %v119
    %205 = vmatprep.subr.mxu0 0.0
    %206 = vmatpush1.msra.mxu0 0.0
    %207 = vmatprep.subr.mxu0 0.0
    %208 = vmatpush1.msra.mxu0 0.0
    %209 = vmatprep.subr.mxu0 0.0
    %210 = vmatpush1.msra.mxu0 0.0
    %211 = vmatprep.subr.mxu0 0.0
    %212 = vmatpush1.msra.mxu0 0.0
    %213 = vmatprep.subr.mxu0 0.0
    %214 = vmatpush1.msra.mxu0 0.0
    %215 = vmatprep.subr.mxu0 0.0
    %216 = vmatpush1.msra.mxu0 0.0
    %217 = vmatprep.subr.mxu0 0.0
    %218 = vmatpush1.msra.mxu0 0.0
    %219 = vmatprep.subr.mxu0 0.0
    %220 = vmatpush1.msra.mxu0 0.0
    %221 = vmatprep.subr.mxu0 0.0
    %222 = vmatpush1.msra.mxu0 0.0
    %223 = vmatprep.subr.mxu0 0.0
    %224 = vmatpush1.msra.mxu0 0.0
    %225 = vmatprep.subr.mxu0 0.0
    %226 = vmatpush1.msra.mxu0 0.0
    %227 = vmatprep.subr.mxu0 0.0
    %228 = vmatpush1.msra.mxu0 0.0
    %229 = vmatprep.subr.mxu0 0.0
    %230 = vmatpush1.msra.mxu0 0.0
    %231 = vmatprep.subr.mxu0 0.0
    %232 = vmatpush1.msra.mxu0 0.0
    %233 = vmatprep.subr.mxu0 0.0
    %234 = vmatpush1.msra.mxu0 0.0
    %235 = vmatprep.subr.mxu0 0.0
    %236 = vmatpush1.msra.mxu0 0.0
    %237 = vmatprep.subr.mxu0 0.0
    %238 = vmatpush1.msra.mxu0 0.0
    %239 = vmatprep.subr.mxu0 0.0
    %240 = vmatpush1.msra.mxu0 0.0
    %241 = vmatprep.subr.mxu0 0.0
    %242 = vmatpush1.msra.mxu0 0.0
    %243 = vmatprep.subr.mxu0 0.0
    %244 = vmatpush1.msra.mxu0 0.0
    %245 = vmatprep.subr.mxu0 0.0
    %246 = vmatpush1.msra.mxu0 0.0
    %247 = vmatprep.subr.mxu0 0.0
    %248 = vmatpush1.msra.mxu0 0.0
    %249 = vmatprep.subr.mxu0 0.0
    %250 = vmatpush1.msra.mxu0 0.0
    %251 = vmatprep.subr.mxu0 0.0
    %252 = vmatpush1.msra.mxu0 0.0
    %253 = vmatprep.subr.mxu0 0.0
    %254 = vmatpush1.msra.mxu0 0.0
    %255 = vmatprep.subr.mxu0 0.0
    %256 = vmatpush1.msra.mxu0 0.0
    %257 = vmatprep.subr.mxu0 0.0
    %258 = vmatpush1.msra.mxu0 0.0
    %259 = vmatprep.subr.mxu0 0.0
    %260 = vmatpush1.msra.mxu0 0.0
    %261 = vmatprep.subr.mxu0 0.0
    %262 = vmatpush1.msra.mxu0 0.0
    %263 = vmatprep.subr.mxu0 0.0
    %264 = vmatpush1.msra.mxu0 0.0
    %265 = vmatprep.mubr.f32.mxu0 0.0
    %266 = vmatmul.mubr.f32.gmra.mrb[0].mxu0 %v109
    %v267 = vpop.f32.mrb[0].mxu0
    %v268 = vadd.f32 0.0, %v267
    %v269 = vpop.f32.mrb[0].mxu0
    %v270 = vadd.f32 0.0, %v269
    %271 = vmatprep.mubr.f32.mxu0 0.0
    %272 = vmatmul.mubr.f32.gmra.mrb[0].mxu0 %v109
    %v273 = vpop.f32.mrb[0].mxu0
    %v274 = vadd.f32 0.0, %v273
    %v275 = vpop.f32.mrb[0].mxu0
    %v276 = vadd.f32 0.0, %v275
    %277 = vdwg.mxu0
    %v278 = vadd.f32 %v99, %v191
    %v279 = vadd.f32 %v100, %v193
    %v280 = vadd.f32 %v101, %v268
    %v281 = vadd.f32 %v102, %v270
    %v282 = vadd.f32 %v103, %v197
    %v283 = vadd.f32 %v104, %v199
    %v284 = vadd.f32 %v105, %v274
    %v285 = vadd.f32 %v106, %v276
    %v286 = vxor.u32 %v278, 2147483648
    %v287 = vxor.u32 %v282, 2147483648
    %v288 = vmul.f32 %v286, 1.442695
    %v289 = vpow.pop %v288
    %v290 = vmul.f32 %v287, 1.442695
    %v291 = vpow.pop %v290
    %v292 = vadd.f32 %v289, 1.0
    %v293 = vadd.f32 %v291, 1.0
    %v294 = vrcp.pop %v292
    %v295 = vmul.f32 1.0, %v294
    %v296 = vrcp.pop %v293
    %v297 = vmul.f32 1.0, %v296
    %v298 = vxor.u32 %v279, 2147483648
    %v299 = vxor.u32 %v283, 2147483648
    %v300 = vmul.f32 %v298, 1.442695
    %v301 = vpow.pop %v300
    %v302 = vmul.f32 %v299, 1.442695
    %v303 = vpow.pop %v302
    %v304 = vadd.f32 %v301, 1.0
    %v305 = vadd.f32 %v303, 1.0
    %v306 = vrcp.pop %v304
    %v307 = vmul.f32 1.0, %v306
    %v308 = vrcp.pop %v305
    %v309 = vmul.f32 1.0, %v308
    %v310 = vtanh.pop %v280
    %v311 = vtanh.pop %v284
    %v312 = vxor.u32 %v281, 2147483648
    %v313 = vxor.u32 %v285, 2147483648
    %v314 = vmul.f32 %v312, 1.442695
    %v315 = vpow.pop %v314
    %v316 = vmul.f32 %v313, 1.442695
    %v317 = vpow.pop %v316
    %v318 = vadd.f32 %v315, 1.0
    %v319 = vadd.f32 %v317, 1.0
    %v320 = vrcp.pop %v318
    %v321 = vmul.f32 1.0, %v320
    %v322 = vrcp.pop %v319
    %v323 = vmul.f32 1.0, %v322
    %v324 = vmul.f32 %v307, 0.0
    %v325 = vmul.f32 %v309, 0.0
    %v326 = vmul.f32 %v295, %v310
    %v327 = vmul.f32 %v297, %v311
    %v328 = vadd.f32 %v324, %v326
    %v329 = vadd.f32 %v325, %v327
    %v330 = vtanh.pop %v328
    %v331 = vtanh.pop %v329
    %v332 = vmul.f32 %v321, %v330
    %v333 = vmul.f32 %v323, %v331
    %334 = vset.pattern.permute.xlu0 1
    %335 = vperm.xlu0 %334, %v37
    %v336 = vpop.permute.xlu0 %335
    %338 = vset.pattern.permute.xlu0 1
    %339 = vperm.xlu0 %338, %v38
    %v340 = vpop.permute.xlu0 %339
    %v342 = vmul.f32 %v336, %v53
    %v343 = vmul.f32 %v336, %v57
    %v344 = vmul.f32 %v336, %v61
    %v345 = vmul.f32 %v336, %v65
    %v346 = vmul.f32 %v340, %v53
    %v347 = vmul.f32 %v340, %v57
    %v348 = vmul.f32 %v340, %v61
    %v349 = vmul.f32 %v340, %v65
    %v350 = vadd.f32 %v342, %v82
    %v351 = vadd.f32 %v343, %v86
    %v352 = vadd.f32 %v344, %v90
    %v353 = vadd.f32 %v345, %v94
    %v354 = vadd.f32 %v346, %v82
    %v355 = vadd.f32 %v347, %v86
    %v356 = vadd.f32 %v348, %v90
    %v357 = vadd.f32 %v349, %v94
    %v359 = vsel %vm107, %v332, 0
    %v362 = vsel %vm107, %v333, 0
    %364 = vmatprep.subr.mxu0 %v26
    %365 = vmatpush1.msra.mxu0 %v25
    %366 = vmatprep.subr.mxu0 %v116
    %367 = vmatpush1.msra.mxu0 %v113
    %368 = vmatprep.subr.mxu0 0.0
    %369 = vmatpush1.msra.mxu0 0.0
    %370 = vmatprep.subr.mxu0 0.0
    %371 = vmatpush1.msra.mxu0 0.0
    %372 = vmatprep.subr.mxu0 0.0
    %373 = vmatpush1.msra.mxu0 0.0
    %374 = vmatprep.subr.mxu0 0.0
    %375 = vmatpush1.msra.mxu0 0.0
    %376 = vmatprep.subr.mxu0 0.0
    %377 = vmatpush1.msra.mxu0 0.0
    %378 = vmatprep.subr.mxu0 0.0
    %379 = vmatpush1.msra.mxu0 0.0
    %380 = vmatprep.subr.mxu0 0.0
    %381 = vmatpush1.msra.mxu0 0.0
    %382 = vmatprep.subr.mxu0 0.0
    %383 = vmatpush1.msra.mxu0 0.0
    %384 = vmatprep.subr.mxu0 0.0
    %385 = vmatpush1.msra.mxu0 0.0
    %386 = vmatprep.subr.mxu0 0.0
    %387 = vmatpush1.msra.mxu0 0.0
    %388 = vmatprep.subr.mxu0 0.0
    %389 = vmatpush1.msra.mxu0 0.0
    %390 = vmatprep.subr.mxu0 0.0
    %391 = vmatpush1.msra.mxu0 0.0
    %392 = vmatprep.subr.mxu0 0.0
    %393 = vmatpush1.msra.mxu0 0.0
    %394 = vmatprep.subr.mxu0 0.0
    %395 = vmatpush1.msra.mxu0 0.0
    %396 = vmatprep.subr.mxu0 0.0
    %397 = vmatpush1.msra.mxu0 0.0
    %398 = vmatprep.subr.mxu0 0.0
    %399 = vmatpush1.msra.mxu0 0.0
    %400 = vmatprep.subr.mxu0 0.0
    %401 = vmatpush1.msra.mxu0 0.0
    %402 = vmatprep.subr.mxu0 0.0
    %403 = vmatpush1.msra.mxu0 0.0
    %404 = vmatprep.subr.mxu0 0.0
    %405 = vmatpush1.msra.mxu0 0.0
    %406 = vmatprep.subr.mxu0 0.0
    %407 = vmatpush1.msra.mxu0 0.0
    %408 = vmatprep.subr.mxu0 0.0
    %409 = vmatpush1.msra.mxu0 0.0
    %410 = vmatprep.subr.mxu0 0.0
    %411 = vmatpush1.msra.mxu0 0.0
    %412 = vmatprep.subr.mxu0 0.0
    %413 = vmatpush1.msra.mxu0 0.0
    %414 = vmatprep.subr.mxu0 0.0
    %415 = vmatpush1.msra.mxu0 0.0
    %416 = vmatprep.subr.mxu0 0.0
    %417 = vmatpush1.msra.mxu0 0.0
    %418 = vmatprep.subr.mxu0 0.0
    %419 = vmatpush1.msra.mxu0 0.0
    %420 = vmatprep.subr.mxu0 0.0
    %421 = vmatpush1.msra.mxu0 0.0
    %422 = vmatprep.subr.mxu0 0.0
    %423 = vmatpush1.msra.mxu0 0.0
    %424 = vmatprep.subr.mxu0 0.0
    %425 = vmatpush1.msra.mxu0 0.0
    %426 = vmatprep.subr.mxu0 0.0
    %427 = vmatpush1.msra.mxu0 0.0
    %428 = vmatprep.mubr.f32.mxu0 0.0
    %429 = vmatmul.mubr.f32.gmra.mrb[0].mxu0 %v359
    %v430 = vpop.f32.mrb[0].mxu0
    %v431 = vadd.f32 0.0, %v430
    %v432 = vpop.f32.mrb[0].mxu0
    %v433 = vadd.f32 0.0, %v432
    %434 = vmatprep.mubr.f32.mxu0 0.0
    %435 = vmatmul.mubr.f32.gmra.mrb[0].mxu0 %v362
    %v436 = vpop.f32.mrb[0].mxu0
    %v437 = vadd.f32 0.0, %v436
    %v438 = vpop.f32.mrb[0].mxu0
    %v439 = vadd.f32 0.0, %v438
    %440 = vdwg.mxu0
    %441 = vmatprep.subr.mxu0 %v28
    %442 = vmatpush1.msra.mxu0 %v27
    %443 = vmatprep.subr.mxu0 %v122
    %444 = vmatpush1.msra.mxu0 %v119
    %445 = vmatprep.subr.mxu0 0.0
    %446 = vmatpush1.msra.mxu0 0.0
    %447 = vmatprep.subr.mxu0 0.0
    %448 = vmatpush1.msra.mxu0 0.0
    %449 = vmatprep.subr.mxu0 0.0
    %450 = vmatpush1.msra.mxu0 0.0
    %451 = vmatprep.subr.mxu0 0.0
    %452 = vmatpush1.msra.mxu0 0.0
    %453 = vmatprep.subr.mxu0 0.0
    %454 = vmatpush1.msra.mxu0 0.0
    %455 = vmatprep.subr.mxu0 0.0
    %456 = vmatpush1.msra.mxu0 0.0
    %457 = vmatprep.subr.mxu0 0.0
    %458 = vmatpush1.msra.mxu0 0.0
    %459 = vmatprep.subr.mxu0 0.0
    %460 = vmatpush1.msra.mxu0 0.0
    %461 = vmatprep.subr.mxu0 0.0
    %462 = vmatpush1.msra.mxu0 0.0
    %463 = vmatprep.subr.mxu0 0.0
    %464 = vmatpush1.msra.mxu0 0.0
    %465 = vmatprep.subr.mxu0 0.0
    %466 = vmatpush1.msra.mxu0 0.0
    %467 = vmatprep.subr.mxu0 0.0
    %468 = vmatpush1.msra.mxu0 0.0
    %469 = vmatprep.subr.mxu0 0.0
    %470 = vmatpush1.msra.mxu0 0.0
    %471 = vmatprep.subr.mxu0 0.0
    %472 = vmatpush1.msra.mxu0 0.0
    %473 = vmatprep.subr.mxu0 0.0
    %474 = vmatpush1.msra.mxu0 0.0
    %475 = vmatprep.subr.mxu0 0.0
    %476 = vmatpush1.msra.mxu0 0.0
    %477 = vmatprep.subr.mxu0 0.0
    %478 = vmatpush1.msra.mxu0 0.0
    %479 = vmatprep.subr.mxu0 0.0
    %480 = vmatpush1.msra.mxu0 0.0
    %481 = vmatprep.subr.mxu0 0.0
    %482 = vmatpush1.msra.mxu0 0.0
    %483 = vmatprep.subr.mxu0 0.0
    %484 = vmatpush1.msra.mxu0 0.0
    %485 = vmatprep.subr.mxu0 0.0
    %486 = vmatpush1.msra.mxu0 0.0
    %487 = vmatprep.subr.mxu0 0.0
    %488 = vmatpush1.msra.mxu0 0.0
    %489 = vmatprep.subr.mxu0 0.0
    %490 = vmatpush1.msra.mxu0 0.0
    %491 = vmatprep.subr.mxu0 0.0
    %492 = vmatpush1.msra.mxu0 0.0
    %493 = vmatprep.subr.mxu0 0.0
    %494 = vmatpush1.msra.mxu0 0.0
    %495 = vmatprep.subr.mxu0 0.0
    %496 = vmatpush1.msra.mxu0 0.0
    %497 = vmatprep.subr.mxu0 0.0
    %498 = vmatpush1.msra.mxu0 0.0
    %499 = vmatprep.subr.mxu0 0.0
    %500 = vmatpush1.msra.mxu0 0.0
    %501 = vmatprep.subr.mxu0 0.0
    %502 = vmatpush1.msra.mxu0 0.0
    %503 = vmatprep.subr.mxu0 0.0
    %504 = vmatpush1.msra.mxu0 0.0
    %505 = vmatprep.mubr.f32.mxu0 0.0
    %506 = vmatmul.mubr.f32.gmra.mrb[0].mxu0 %v359
    %v507 = vpop.f32.mrb[0].mxu0
    %v508 = vadd.f32 0.0, %v507
    %v509 = vpop.f32.mrb[0].mxu0
    %v510 = vadd.f32 0.0, %v509
    %511 = vmatprep.mubr.f32.mxu0 0.0
    %512 = vmatmul.mubr.f32.gmra.mrb[0].mxu0 %v362
    %v513 = vpop.f32.mrb[0].mxu0
    %v514 = vadd.f32 0.0, %v513
    %v515 = vpop.f32.mrb[0].mxu0
    %v516 = vadd.f32 0.0, %v515
    %517 = vdwg.mxu0
    %v518 = vadd.f32 %v350, %v431
    %v519 = vadd.f32 %v351, %v433
    %v520 = vadd.f32 %v352, %v508
    %v521 = vadd.f32 %v353, %v510
    %v522 = vadd.f32 %v354, %v437
    %v523 = vadd.f32 %v355, %v439
    %v524 = vadd.f32 %v356, %v514
    %v525 = vadd.f32 %v357, %v516
    %v526 = vxor.u32 %v518, 2147483648
    %v527 = vxor.u32 %v522, 2147483648
    %v528 = vmul.f32 %v526, 1.442695
    %v529 = vpow.pop %v528
    %v530 = vmul.f32 %v527, 1.442695
    %v531 = vpow.pop %v530
    %v532 = vadd.f32 %v529, 1.0
    %v533 = vadd.f32 %v531, 1.0
    %v534 = vrcp.pop %v532
    %v535 = vmul.f32 1.0, %v534
    %v536 = vrcp.pop %v533
    %v537 = vmul.f32 1.0, %v536
    %v538 = vxor.u32 %v519, 2147483648
    %v539 = vxor.u32 %v523, 2147483648
    %v540 = vmul.f32 %v538, 1.442695
    %v541 = vpow.pop %v540
    %v542 = vmul.f32 %v539, 1.442695
    %v543 = vpow.pop %v542
    %v544 = vadd.f32 %v541, 1.0
    %v545 = vadd.f32 %v543, 1.0
    %v546 = vrcp.pop %v544
    %v547 = vmul.f32 1.0, %v546
    %v548 = vrcp.pop %v545
    %v549 = vmul.f32 1.0, %v548
    %v550 = vtanh.pop %v520
    %v551 = vtanh.pop %v524
    %v552 = vxor.u32 %v521, 2147483648
    %v553 = vxor.u32 %v525, 2147483648
    %v554 = vmul.f32 %v552, 1.442695
    %v555 = vpow.pop %v554
    %v556 = vmul.f32 %v553, 1.442695
    %v557 = vpow.pop %v556
    %v558 = vadd.f32 %v555, 1.0
    %v559 = vadd.f32 %v557, 1.0
    %v560 = vrcp.pop %v558
    %v561 = vmul.f32 1.0, %v560
    %v562 = vrcp.pop %v559
    %v563 = vmul.f32 1.0, %v562
    %v564 = vmul.f32 %v547, %v328
    %v565 = vmul.f32 %v549, %v329
    %v566 = vmul.f32 %v535, %v550
    %v567 = vmul.f32 %v537, %v551
    %v568 = vadd.f32 %v564, %v566
    %v569 = vadd.f32 %v565, %v567
    %v570 = vtanh.pop %v568
    %v571 = vtanh.pop %v569
    %v572 = vmul.f32 %v561, %v570
    %v573 = vmul.f32 %v563, %v571
    %574 = vset.pattern.permute.xlu0 2
    %575 = vperm.xlu0 %574, %v37
    %v576 = vpop.permute.xlu0 %575
    %578 = vset.pattern.permute.xlu0 2
    %579 = vperm.xlu0 %578, %v38
    %v580 = vpop.permute.xlu0 %579
    %v582 = vmul.f32 %v576, %v53
    %v583 = vmul.f32 %v576, %v57
    %v584 = vmul.f32 %v576, %v61
    %v585 = vmul.f32 %v576, %v65
    %v586 = vmul.f32 %v580, %v53
    %v587 = vmul.f32 %v580, %v57
    %v588 = vmul.f32 %v580, %v61
    %v589 = vmul.f32 %v580, %v65
    %v590 = vadd.f32 %v582, %v82
    %v591 = vadd.f32 %v583, %v86
    %v592 = vadd.f32 %v584, %v90
    %v593 = vadd.f32 %v585, %v94
    %v594 = vadd.f32 %v586, %v82
    %v595 = vadd.f32 %v587, %v86
    %v596 = vadd.f32 %v588, %v90
    %v597 = vadd.f32 %v589, %v94
    %v599 = vsel %vm107, %v572, 0
    %v602 = vsel %vm107, %v573, 0
    %604 = vmatprep.subr.mxu0 %v26
    %605 = vmatpush1.msra.mxu0 %v25
    %606 = vmatprep.subr.mxu0 %v116
    %607 = vmatpush1.msra.mxu0 %v113
    %608 = vmatprep.subr.mxu0 0.0
    %609 = vmatpush1.msra.mxu0 0.0
    %610 = vmatprep.subr.mxu0 0.0
    %611 = vmatpush1.msra.mxu0 0.0
    %612 = vmatprep.subr.mxu0 0.0
    %613 = vmatpush1.msra.mxu0 0.0
    %614 = vmatprep.subr.mxu0 0.0
    %615 = vmatpush1.msra.mxu0 0.0
    %616 = vmatprep.subr.mxu0 0.0
    %617 = vmatpush1.msra.mxu0 0.0
    %618 = vmatprep.subr.mxu0 0.0
    %619 = vmatpush1.msra.mxu0 0.0
    %620 = vmatprep.subr.mxu0 0.0
    %621 = vmatpush1.msra.mxu0 0.0
    %622 = vmatprep.subr.mxu0 0.0
    %623 = vmatpush1.msra.mxu0 0.0
    %624 = vmatprep.subr.mxu0 0.0
    %625 = vmatpush1.msra.mxu0 0.0
    %626 = vmatprep.subr.mxu0 0.0
    %627 = vmatpush1.msra.mxu0 0.0
    %628 = vmatprep.subr.mxu0 0.0
    %629 = vmatpush1.msra.mxu0 0.0
    %630 = vmatprep.subr.mxu0 0.0
    %631 = vmatpush1.msra.mxu0 0.0
    %632 = vmatprep.subr.mxu0 0.0
    %633 = vmatpush1.msra.mxu0 0.0
    %634 = vmatprep.subr.mxu0 0.0
    %635 = vmatpush1.msra.mxu0 0.0
    %636 = vmatprep.subr.mxu0 0.0
    %637 = vmatpush1.msra.mxu0 0.0
    %638 = vmatprep.subr.mxu0 0.0
    %639 = vmatpush1.msra.mxu0 0.0
    %640 = vmatprep.subr.mxu0 0.0
    %641 = vmatpush1.msra.mxu0 0.0
    %642 = vmatprep.subr.mxu0 0.0
    %643 = vmatpush1.msra.mxu0 0.0
    %644 = vmatprep.subr.mxu0 0.0
    %645 = vmatpush1.msra.mxu0 0.0
    %646 = vmatprep.subr.mxu0 0.0
    %647 = vmatpush1.msra.mxu0 0.0
    %648 = vmatprep.subr.mxu0 0.0
    %649 = vmatpush1.msra.mxu0 0.0
    %650 = vmatprep.subr.mxu0 0.0
    %651 = vmatpush1.msra.mxu0 0.0
    %652 = vmatprep.subr.mxu0 0.0
    %653 = vmatpush1.msra.mxu0 0.0
    %654 = vmatprep.subr.mxu0 0.0
    %655 = vmatpush1.msra.mxu0 0.0
    %656 = vmatprep.subr.mxu0 0.0
    %657 = vmatpush1.msra.mxu0 0.0
    %658 = vmatprep.subr.mxu0 0.0
    %659 = vmatpush1.msra.mxu0 0.0
    %660 = vmatprep.subr.mxu0 0.0
    %661 = vmatpush1.msra.mxu0 0.0
    %662 = vmatprep.subr.mxu0 0.0
    %663 = vmatpush1.msra.mxu0 0.0
    %664 = vmatprep.subr.mxu0 0.0
    %665 = vmatpush1.msra.mxu0 0.0
    %666 = vmatprep.subr.mxu0 0.0
    %667 = vmatpush1.msra.mxu0 0.0
    %668 = vmatprep.mubr.f32.mxu0 0.0
    %669 = vmatmul.mubr.f32.gmra.mrb[0].mxu0 %v599
    %v670 = vpop.f32.mrb[0].mxu0
    %v671 = vadd.f32 0.0, %v670
    %v672 = vpop.f32.mrb[0].mxu0
    %v673 = vadd.f32 0.0, %v672
    %674 = vmatprep.mubr.f32.mxu0 0.0
    %675 = vmatmul.mubr.f32.gmra.mrb[0].mxu0 %v602
    %v676 = vpop.f32.mrb[0].mxu0
    %v677 = vadd.f32 0.0, %v676
    %v678 = vpop.f32.mrb[0].mxu0
    %v679 = vadd.f32 0.0, %v678
    %680 = vdwg.mxu0
    %681 = vmatprep.subr.mxu0 %v28
    %682 = vmatpush1.msra.mxu0 %v27
    %683 = vmatprep.subr.mxu0 %v122
    %684 = vmatpush1.msra.mxu0 %v119
    %685 = vmatprep.subr.mxu0 0.0
    %686 = vmatpush1.msra.mxu0 0.0
    %687 = vmatprep.subr.mxu0 0.0
    %688 = vmatpush1.msra.mxu0 0.0
    %689 = vmatprep.subr.mxu0 0.0
    %690 = vmatpush1.msra.mxu0 0.0
    %691 = vmatprep.subr.mxu0 0.0
    %692 = vmatpush1.msra.mxu0 0.0
    %693 = vmatprep.subr.mxu0 0.0
    %694 = vmatpush1.msra.mxu0 0.0
    %695 = vmatprep.subr.mxu0 0.0
    %696 = vmatpush1.msra.mxu0 0.0
    %697 = vmatprep.subr.mxu0 0.0
    %698 = vmatpush1.msra.mxu0 0.0
    %699 = vmatprep.subr.mxu0 0.0
    %700 = vmatpush1.msra.mxu0 0.0
    %701 = vmatprep.subr.mxu0 0.0
    %702 = vmatpush1.msra.mxu0 0.0
    %703 = vmatprep.subr.mxu0 0.0
    %704 = vmatpush1.msra.mxu0 0.0
    %705 = vmatprep.subr.mxu0 0.0
    %706 = vmatpush1.msra.mxu0 0.0
    %707 = vmatprep.subr.mxu0 0.0
    %708 = vmatpush1.msra.mxu0 0.0
    %709 = vmatprep.subr.mxu0 0.0
    %710 = vmatpush1.msra.mxu0 0.0
    %711 = vmatprep.subr.mxu0 0.0
    %712 = vmatpush1.msra.mxu0 0.0
    %713 = vmatprep.subr.mxu0 0.0
    %714 = vmatpush1.msra.mxu0 0.0
    %715 = vmatprep.subr.mxu0 0.0
    %716 = vmatpush1.msra.mxu0 0.0
    %717 = vmatprep.subr.mxu0 0.0
    %718 = vmatpush1.msra.mxu0 0.0
    %719 = vmatprep.subr.mxu0 0.0
    %720 = vmatpush1.msra.mxu0 0.0
    %721 = vmatprep.subr.mxu0 0.0
    %722 = vmatpush1.msra.mxu0 0.0
    %723 = vmatprep.subr.mxu0 0.0
    %724 = vmatpush1.msra.mxu0 0.0
    %725 = vmatprep.subr.mxu0 0.0
    %726 = vmatpush1.msra.mxu0 0.0
    %727 = vmatprep.subr.mxu0 0.0
    %728 = vmatpush1.msra.mxu0 0.0
    %729 = vmatprep.subr.mxu0 0.0
    %730 = vmatpush1.msra.mxu0 0.0
    %731 = vmatprep.subr.mxu0 0.0
    %732 = vmatpush1.msra.mxu0 0.0
    %733 = vmatprep.subr.mxu0 0.0
    %734 = vmatpush1.msra.mxu0 0.0
    %735 = vmatprep.subr.mxu0 0.0
    %736 = vmatpush1.msra.mxu0 0.0
    %737 = vmatprep.subr.mxu0 0.0
    %738 = vmatpush1.msra.mxu0 0.0
    %739 = vmatprep.subr.mxu0 0.0
    %740 = vmatpush1.msra.mxu0 0.0
    %741 = vmatprep.subr.mxu0 0.0
    %742 = vmatpush1.msra.mxu0 0.0
    %743 = vmatprep.subr.mxu0 0.0
    %744 = vmatpush1.msra.mxu0 0.0
    %745 = vmatprep.mubr.f32.mxu0 0.0
    %746 = vmatmul.mubr.f32.gmra.mrb[0].mxu0 %v599
    %v747 = vpop.f32.mrb[0].mxu0
    %v748 = vadd.f32 0.0, %v747
    %v749 = vpop.f32.mrb[0].mxu0
    %v750 = vadd.f32 0.0, %v749
    %751 = vmatprep.mubr.f32.mxu0 0.0
    %752 = vmatmul.mubr.f32.gmra.mrb[0].mxu0 %v602
    %v753 = vpop.f32.mrb[0].mxu0
    %v754 = vadd.f32 0.0, %v753
    %v755 = vpop.f32.mrb[0].mxu0
    %v756 = vadd.f32 0.0, %v755
    %757 = vdwg.mxu0
    %v758 = vadd.f32 %v590, %v671
    %v759 = vadd.f32 %v591, %v673
    %v760 = vadd.f32 %v592, %v748
    %v761 = vadd.f32 %v593, %v750
    %v762 = vadd.f32 %v594, %v677
    %v763 = vadd.f32 %v595, %v679
    %v764 = vadd.f32 %v596, %v754
    %v765 = vadd.f32 %v597, %v756
    %v766 = vxor.u32 %v758, 2147483648
    %v767 = vxor.u32 %v762, 2147483648
    %v768 = vmul.f32 %v766, 1.442695
    %v769 = vpow.pop %v768
    %v770 = vmul.f32 %v767, 1.442695
    %v771 = vpow.pop %v770
    %v772 = vadd.f32 %v769, 1.0
    %v773 = vadd.f32 %v771, 1.0
    %v774 = vrcp.pop %v772
    %v775 = vmul.f32 1.0, %v774
    %v776 = vrcp.pop %v773
    %v777 = vmul.f32 1.0, %v776
    %v778 = vxor.u32 %v759, 2147483648
    %v779 = vxor.u32 %v763, 2147483648
    %v780 = vmul.f32 %v778, 1.442695
    %v781 = vpow.pop %v780
    %v782 = vmul.f32 %v779, 1.442695
    %v783 = vpow.pop %v782
    %v784 = vadd.f32 %v781, 1.0
    %v785 = vadd.f32 %v783, 1.0
    %v786 = vrcp.pop %v784
    %v787 = vmul.f32 1.0, %v786
    %v788 = vrcp.pop %v785
    %v789 = vmul.f32 1.0, %v788
    %v790 = vtanh.pop %v760
    %v791 = vtanh.pop %v764
    %v792 = vxor.u32 %v761, 2147483648
    %v793 = vxor.u32 %v765, 2147483648
    %v794 = vmul.f32 %v792, 1.442695
    %v795 = vpow.pop %v794
    %v796 = vmul.f32 %v793, 1.442695
    %v797 = vpow.pop %v796
    %v798 = vadd.f32 %v795, 1.0
    %v799 = vadd.f32 %v797, 1.0
    %v800 = vrcp.pop %v798
    %v801 = vmul.f32 1.0, %v800
    %v802 = vrcp.pop %v799
    %v803 = vmul.f32 1.0, %v802
    %v804 = vmul.f32 %v787, %v568
    %v805 = vmul.f32 %v789, %v569
    %v806 = vmul.f32 %v775, %v790
    %v807 = vmul.f32 %v777, %v791
    %v808 = vadd.f32 %v804, %v806
    %v809 = vadd.f32 %v805, %v807
    %v810 = vtanh.pop %v808
    %v811 = vtanh.pop %v809
    %v812 = vmul.f32 %v801, %v810
    %v813 = vmul.f32 %v803, %v811
    %814 = vset.pattern.permute.xlu0 3
    %815 = vperm.xlu0 %814, %v37
    %v816 = vpop.permute.xlu0 %815
    %818 = vset.pattern.permute.xlu0 3
    %819 = vperm.xlu0 %818, %v38
    %v820 = vpop.permute.xlu0 %819
    %v822 = vmul.f32 %v816, %v53
    %v823 = vmul.f32 %v816, %v57
    %v824 = vmul.f32 %v816, %v61
    %v825 = vmul.f32 %v816, %v65
    %v826 = vmul.f32 %v820, %v53
    %v827 = vmul.f32 %v820, %v57
    %v828 = vmul.f32 %v820, %v61
    %v829 = vmul.f32 %v820, %v65
    %v830 = vadd.f32 %v822, %v82
    %v831 = vadd.f32 %v823, %v86
    %v832 = vadd.f32 %v824, %v90
    %v833 = vadd.f32 %v825, %v94
    %v834 = vadd.f32 %v826, %v82
    %v835 = vadd.f32 %v827, %v86
    %v836 = vadd.f32 %v828, %v90
    %v837 = vadd.f32 %v829, %v94
    %v839 = vsel %vm107, %v812, 0
    %v842 = vsel %vm107, %v813, 0
    %844 = vmatprep.subr.mxu0 %v26
    %845 = vmatpush1.msra.mxu0 %v25
    %846 = vmatprep.subr.mxu0 %v116
    %847 = vmatpush1.msra.mxu0 %v113
    %848 = vmatprep.subr.mxu0 0.0
    %849 = vmatpush1.msra.mxu0 0.0
    %850 = vmatprep.subr.mxu0 0.0
    %851 = vmatpush1.msra.mxu0 0.0
    %852 = vmatprep.subr.mxu0 0.0
    %853 = vmatpush1.msra.mxu0 0.0
    %854 = vmatprep.subr.mxu0 0.0
    %855 = vmatpush1.msra.mxu0 0.0
    %856 = vmatprep.subr.mxu0 0.0
    %857 = vmatpush1.msra.mxu0 0.0
    %858 = vmatprep.subr.mxu0 0.0
    %859 = vmatpush1.msra.mxu0 0.0
    %860 = vmatprep.subr.mxu0 0.0
    %861 = vmatpush1.msra.mxu0 0.0
    %862 = vmatprep.subr.mxu0 0.0
    %863 = vmatpush1.msra.mxu0 0.0
    %864 = vmatprep.subr.mxu0 0.0
    %865 = vmatpush1.msra.mxu0 0.0
    %866 = vmatprep.subr.mxu0 0.0
    %867 = vmatpush1.msra.mxu0 0.0
    %868 = vmatprep.subr.mxu0 0.0
    %869 = vmatpush1.msra.mxu0 0.0
    %870 = vmatprep.subr.mxu0 0.0
    %871 = vmatpush1.msra.mxu0 0.0
    %872 = vmatprep.subr.mxu0 0.0
    %873 = vmatpush1.msra.mxu0 0.0
    %874 = vmatprep.subr.mxu0 0.0
    %875 = vmatpush1.msra.mxu0 0.0
    %876 = vmatprep.subr.mxu0 0.0
    %877 = vmatpush1.msra.mxu0 0.0
    %878 = vmatprep.subr.mxu0 0.0
    %879 = vmatpush1.msra.mxu0 0.0
    %880 = vmatprep.subr.mxu0 0.0
    %881 = vmatpush1.msra.mxu0 0.0
    %882 = vmatprep.subr.mxu0 0.0
    %883 = vmatpush1.msra.mxu0 0.0
    %884 = vmatprep.subr.mxu0 0.0
    %885 = vmatpush1.msra.mxu0 0.0
    %886 = vmatprep.subr.mxu0 0.0
    %887 = vmatpush1.msra.mxu0 0.0
    %888 = vmatprep.subr.mxu0 0.0
    %889 = vmatpush1.msra.mxu0 0.0
    %890 = vmatprep.subr.mxu0 0.0
    %891 = vmatpush1.msra.mxu0 0.0
    %892 = vmatprep.subr.mxu0 0.0
    %893 = vmatpush1.msra.mxu0 0.0
    %894 = vmatprep.subr.mxu0 0.0
    %895 = vmatpush1.msra.mxu0 0.0
    %896 = vmatprep.subr.mxu0 0.0
    %897 = vmatpush1.msra.mxu0 0.0
    %898 = vmatprep.subr.mxu0 0.0
    %899 = vmatpush1.msra.mxu0 0.0
    %900 = vmatprep.subr.mxu0 0.0
    %901 = vmatpush1.msra.mxu0 0.0
    %902 = vmatprep.subr.mxu0 0.0
    %903 = vmatpush1.msra.mxu0 0.0
    %904 = vmatprep.subr.mxu0 0.0
    %905 = vmatpush1.msra.mxu0 0.0
    %906 = vmatprep.subr.mxu0 0.0
    %907 = vmatpush1.msra.mxu0 0.0
    %908 = vmatprep.mubr.f32.mxu0 0.0
    %909 = vmatmul.mubr.f32.gmra.mrb[0].mxu0 %v839
    %v910 = vpop.f32.mrb[0].mxu0
    %v911 = vadd.f32 0.0, %v910
    %v912 = vpop.f32.mrb[0].mxu0
    %v913 = vadd.f32 0.0, %v912
    %914 = vmatprep.mubr.f32.mxu0 0.0
    %915 = vmatmul.mubr.f32.gmra.mrb[0].mxu0 %v842
    %v916 = vpop.f32.mrb[0].mxu0
    %v917 = vadd.f32 0.0, %v916
    %v918 = vpop.f32.mrb[0].mxu0
    %v919 = vadd.f32 0.0, %v918
    %920 = vdwg.mxu0
    %921 = vmatprep.subr.mxu0 %v28
    %922 = vmatpush1.msra.mxu0 %v27
    %923 = vmatprep.subr.mxu0 %v122
    %924 = vmatpush1.msra.mxu0 %v119
    %925 = vmatprep.subr.mxu0 0.0
    %926 = vmatpush1.msra.mxu0 0.0
    %927 = vmatprep.subr.mxu0 0.0
    %928 = vmatpush1.msra.mxu0 0.0
    %929 = vmatprep.subr.mxu0 0.0
    %930 = vmatpush1.msra.mxu0 0.0
    %931 = vmatprep.subr.mxu0 0.0
    %932 = vmatpush1.msra.mxu0 0.0
    %933 = vmatprep.subr.mxu0 0.0
    %934 = vmatpush1.msra.mxu0 0.0
    %935 = vmatprep.subr.mxu0 0.0
    %936 = vmatpush1.msra.mxu0 0.0
    %937 = vmatprep.subr.mxu0 0.0
    %938 = vmatpush1.msra.mxu0 0.0
    %939 = vmatprep.subr.mxu0 0.0
    %940 = vmatpush1.msra.mxu0 0.0
    %941 = vmatprep.subr.mxu0 0.0
    %942 = vmatpush1.msra.mxu0 0.0
    %943 = vmatprep.subr.mxu0 0.0
    %944 = vmatpush1.msra.mxu0 0.0
    %945 = vmatprep.subr.mxu0 0.0
    %946 = vmatpush1.msra.mxu0 0.0
    %947 = vmatprep.subr.mxu0 0.0
    %948 = vmatpush1.msra.mxu0 0.0
    %949 = vmatprep.subr.mxu0 0.0
    %950 = vmatpush1.msra.mxu0 0.0
    %951 = vmatprep.subr.mxu0 0.0
    %952 = vmatpush1.msra.mxu0 0.0
    %953 = vmatprep.subr.mxu0 0.0
    %954 = vmatpush1.msra.mxu0 0.0
    %955 = vmatprep.subr.mxu0 0.0
    %956 = vmatpush1.msra.mxu0 0.0
    %957 = vmatprep.subr.mxu0 0.0
    %958 = vmatpush1.msra.mxu0 0.0
    %959 = vmatprep.subr.mxu0 0.0
    %960 = vmatpush1.msra.mxu0 0.0
    %961 = vmatprep.subr.mxu0 0.0
    %962 = vmatpush1.msra.mxu0 0.0
    %963 = vmatprep.subr.mxu0 0.0
    %964 = vmatpush1.msra.mxu0 0.0
    %965 = vmatprep.subr.mxu0 0.0
    %966 = vmatpush1.msra.mxu0 0.0
    %967 = vmatprep.subr.mxu0 0.0
    %968 = vmatpush1.msra.mxu0 0.0
    %969 = vmatprep.subr.mxu0 0.0
    %970 = vmatpush1.msra.mxu0 0.0
    %971 = vmatprep.subr.mxu0 0.0
    %972 = vmatpush1.msra.mxu0 0.0
    %973 = vmatprep.subr.mxu0 0.0
    %974 = vmatpush1.msra.mxu0 0.0
    %975 = vmatprep.subr.mxu0 0.0
    %976 = vmatpush1.msra.mxu0 0.0
    %977 = vmatprep.subr.mxu0 0.0
    %978 = vmatpush1.msra.mxu0 0.0
    %979 = vmatprep.subr.mxu0 0.0
    %980 = vmatpush1.msra.mxu0 0.0
    %981 = vmatprep.subr.mxu0 0.0
    %982 = vmatpush1.msra.mxu0 0.0
    %983 = vmatprep.subr.mxu0 0.0
    %984 = vmatpush1.msra.mxu0 0.0
    %985 = vmatprep.mubr.f32.mxu0 0.0
    %986 = vmatmul.mubr.f32.gmra.mrb[0].mxu0 %v839
    %v987 = vpop.f32.mrb[0].mxu0
    %v988 = vadd.f32 0.0, %v987
    %v989 = vpop.f32.mrb[0].mxu0
    %v990 = vadd.f32 0.0, %v989
    %991 = vmatprep.mubr.f32.mxu0 0.0
    %992 = vmatmul.mubr.f32.gmra.mrb[0].mxu0 %v842
    %v993 = vpop.f32.mrb[0].mxu0
    %v994 = vadd.f32 0.0, %v993
    %v995 = vpop.f32.mrb[0].mxu0
    %v996 = vadd.f32 0.0, %v995
    %997 = vdwg.mxu0
    %v998 = vadd.f32 %v830, %v911
    %v999 = vadd.f32 %v831, %v913
    %v1000 = vadd.f32 %v832, %v988
    %v1001 = vadd.f32 %v833, %v990
    %v1002 = vadd.f32 %v834, %v917
    %v1003 = vadd.f32 %v835, %v919
    %v1004 = vadd.f32 %v836, %v994
    %v1005 = vadd.f32 %v837, %v996
    %v1006 = vxor.u32 %v998, 2147483648
    %v1007 = vxor.u32 %v1002, 2147483648
    %v1008 = vmul.f32 %v1006, 1.442695
    %v1009 = vpow.pop %v1008
    %v1010 = vmul.f32 %v1007, 1.442695
    %v1011 = vpow.pop %v1010
    %v1012 = vadd.f32 %v1009, 1.0
    %v1013 = vadd.f32 %v1011, 1.0
    %v1014 = vrcp.pop %v1012
    %v1015 = vmul.f32 1.0, %v1014
    %v1016 = vrcp.pop %v1013
    %v1017 = vmul.f32 1.0, %v1016
    %v1018 = vxor.u32 %v999, 2147483648
    %v1019 = vxor.u32 %v1003, 2147483648
    %v1020 = vmul.f32 %v1018, 1.442695
    %v1021 = vpow.pop %v1020
    %v1022 = vmul.f32 %v1019, 1.442695
    %v1023 = vpow.pop %v1022
    %v1024 = vadd.f32 %v1021, 1.0
    %v1025 = vadd.f32 %v1023, 1.0
    %v1026 = vrcp.pop %v1024
    %v1027 = vmul.f32 1.0, %v1026
    %v1028 = vrcp.pop %v1025
    %v1029 = vmul.f32 1.0, %v1028
    %v1030 = vtanh.pop %v1000
    %v1031 = vtanh.pop %v1004
    %v1032 = vxor.u32 %v1001, 2147483648
    %v1033 = vxor.u32 %v1005, 2147483648
    %v1034 = vmul.f32 %v1032, 1.442695
    %v1035 = vpow.pop %v1034
    %v1036 = vmul.f32 %v1033, 1.442695
    %v1037 = vpow.pop %v1036
    %v1038 = vadd.f32 %v1035, 1.0
    %v1039 = vadd.f32 %v1037, 1.0
    %v1040 = vrcp.pop %v1038
    %v1041 = vmul.f32 1.0, %v1040
    %v1042 = vrcp.pop %v1039
    %v1043 = vmul.f32 1.0, %v1042
    %v1044 = vmul.f32 %v1027, %v808
    %v1045 = vmul.f32 %v1029, %v809
    %v1046 = vmul.f32 %v1015, %v1030
    %v1047 = vmul.f32 %v1017, %v1031
    %v1048 = vadd.f32 %v1044, %v1046
    %v1049 = vadd.f32 %v1045, %v1047
    %v1050 = vtanh.pop %v1048
    %v1051 = vtanh.pop %v1049
    %v1052 = vmul.f32 %v1041, %v1050
    %v1053 = vmul.f32 %v1043, %v1051
    %1054 = vset.pattern.permute.xlu0 4
    %1055 = vperm.xlu0 %1054, %v37
    %v1056 = vpop.permute.xlu0 %1055
    %1058 = vset.pattern.permute.xlu0 4
    %1059 = vperm.xlu0 %1058, %v38
    %v1060 = vpop.permute.xlu0 %1059
    %v1062 = vmul.f32 %v1056, %v53
    %v1063 = vmul.f32 %v1056, %v57
    %v1064 = vmul.f32 %v1056, %v61
    %v1065 = vmul.f32 %v1056, %v65
    %v1066 = vmul.f32 %v1060, %v53
    %v1067 = vmul.f32 %v1060, %v57
    %v1068 = vmul.f32 %v1060, %v61
    %v1069 = vmul.f32 %v1060, %v65
    %v1070 = vadd.f32 %v1062, %v82
    %v1071 = vadd.f32 %v1063, %v86
    %v1072 = vadd.f32 %v1064, %v90
    %v1073 = vadd.f32 %v1065, %v94
    %v1074 = vadd.f32 %v1066, %v82
    %v1075 = vadd.f32 %v1067, %v86
    %v1076 = vadd.f32 %v1068, %v90
    %v1077 = vadd.f32 %v1069, %v94
    %v1079 = vsel %vm107, %v1052, 0
    %v1082 = vsel %vm107, %v1053, 0
    %1084 = vmatprep.subr.mxu0 %v26
    %1085 = vmatpush1.msra.mxu0 %v25
    %1086 = vmatprep.subr.mxu0 %v116
    %1087 = vmatpush1.msra.mxu0 %v113
    %1088 = vmatprep.subr.mxu0 0.0
    %1089 = vmatpush1.msra.mxu0 0.0
    %1090 = vmatprep.subr.mxu0 0.0
    %1091 = vmatpush1.msra.mxu0 0.0
    %1092 = vmatprep.subr.mxu0 0.0
    %1093 = vmatpush1.msra.mxu0 0.0
    %1094 = vmatprep.subr.mxu0 0.0
    %1095 = vmatpush1.msra.mxu0 0.0
    %1096 = vmatprep.subr.mxu0 0.0
    %1097 = vmatpush1.msra.mxu0 0.0
    %1098 = vmatprep.subr.mxu0 0.0
    %1099 = vmatpush1.msra.mxu0 0.0
    %1100 = vmatprep.subr.mxu0 0.0
    %1101 = vmatpush1.msra.mxu0 0.0
    %1102 = vmatprep.subr.mxu0 0.0
    %1103 = vmatpush1.msra.mxu0 0.0
    %1104 = vmatprep.subr.mxu0 0.0
    %1105 = vmatpush1.msra.mxu0 0.0
    %1106 = vmatprep.subr.mxu0 0.0
    %1107 = vmatpush1.msra.mxu0 0.0
    %1108 = vmatprep.subr.mxu0 0.0
    %1109 = vmatpush1.msra.mxu0 0.0
    %1110 = vmatprep.subr.mxu0 0.0
    %1111 = vmatpush1.msra.mxu0 0.0
    %1112 = vmatprep.subr.mxu0 0.0
    %1113 = vmatpush1.msra.mxu0 0.0
    %1114 = vmatprep.subr.mxu0 0.0
    %1115 = vmatpush1.msra.mxu0 0.0
    %1116 = vmatprep.subr.mxu0 0.0
    %1117 = vmatpush1.msra.mxu0 0.0
    %1118 = vmatprep.subr.mxu0 0.0
    %1119 = vmatpush1.msra.mxu0 0.0
    %1120 = vmatprep.subr.mxu0 0.0
    %1121 = vmatpush1.msra.mxu0 0.0
    %1122 = vmatprep.subr.mxu0 0.0
    %1123 = vmatpush1.msra.mxu0 0.0
    %1124 = vmatprep.subr.mxu0 0.0
    %1125 = vmatpush1.msra.mxu0 0.0
    %1126 = vmatprep.subr.mxu0 0.0
    %1127 = vmatpush1.msra.mxu0 0.0
    %1128 = vmatprep.subr.mxu0 0.0
    %1129 = vmatpush1.msra.mxu0 0.0
    %1130 = vmatprep.subr.mxu0 0.0
    %1131 = vmatpush1.msra.mxu0 0.0
    %1132 = vmatprep.subr.mxu0 0.0
    %1133 = vmatpush1.msra.mxu0 0.0
    %1134 = vmatprep.subr.mxu0 0.0
    %1135 = vmatpush1.msra.mxu0 0.0
    %1136 = vmatprep.subr.mxu0 0.0
    %1137 = vmatpush1.msra.mxu0 0.0
    %1138 = vmatprep.subr.mxu0 0.0
    %1139 = vmatpush1.msra.mxu0 0.0
    %1140 = vmatprep.subr.mxu0 0.0
    %1141 = vmatpush1.msra.mxu0 0.0
    %1142 = vmatprep.subr.mxu0 0.0
    %1143 = vmatpush1.msra.mxu0 0.0
    %1144 = vmatprep.subr.mxu0 0.0
    %1145 = vmatpush1.msra.mxu0 0.0
    %1146 = vmatprep.subr.mxu0 0.0
    %1147 = vmatpush1.msra.mxu0 0.0
    %1148 = vmatprep.mubr.f32.mxu0 0.0
    %1149 = vmatmul.mubr.f32.gmra.mrb[0].mxu0 %v1079
    %v1150 = vpop.f32.mrb[0].mxu0
    %v1151 = vadd.f32 0.0, %v1150
    %v1152 = vpop.f32.mrb[0].mxu0
    %v1153 = vadd.f32 0.0, %v1152
    %1154 = vmatprep.mubr.f32.mxu0 0.0
    %1155 = vmatmul.mubr.f32.gmra.mrb[0].mxu0 %v1082
    %v1156 = vpop.f32.mrb[0].mxu0
    %v1157 = vadd.f32 0.0, %v1156
    %v1158 = vpop.f32.mrb[0].mxu0
    %v1159 = vadd.f32 0.0, %v1158
    %1160 = vdwg.mxu0
    %1161 = vmatprep.subr.mxu0 %v28
    %1162 = vmatpush1.msra.mxu0 %v27
    %1163 = vmatprep.subr.mxu0 %v122
    %1164 = vmatpush1.msra.mxu0 %v119
    %1165 = vmatprep.subr.mxu0 0.0
    %1166 = vmatpush1.msra.mxu0 0.0
    %1167 = vmatprep.subr.mxu0 0.0
    %1168 = vmatpush1.msra.mxu0 0.0
    %1169 = vmatprep.subr.mxu0 0.0
    %1170 = vmatpush1.msra.mxu0 0.0
    %1171 = vmatprep.subr.mxu0 0.0
    %1172 = vmatpush1.msra.mxu0 0.0
    %1173 = vmatprep.subr.mxu0 0.0
    %1174 = vmatpush1.msra.mxu0 0.0
    %1175 = vmatprep.subr.mxu0 0.0
    %1176 = vmatpush1.msra.mxu0 0.0
    %1177 = vmatprep.subr.mxu0 0.0
    %1178 = vmatpush1.msra.mxu0 0.0
    %1179 = vmatprep.subr.mxu0 0.0
    %1180 = vmatpush1.msra.mxu0 0.0
    %1181 = vmatprep.subr.mxu0 0.0
    %1182 = vmatpush1.msra.mxu0 0.0
    %1183 = vmatprep.subr.mxu0 0.0
    %1184 = vmatpush1.msra.mxu0 0.0
    %1185 = vmatprep.subr.mxu0 0.0
    %1186 = vmatpush1.msra.mxu0 0.0
    %1187 = vmatprep.subr.mxu0 0.0
    %1188 = vmatpush1.msra.mxu0 0.0
    %1189 = vmatprep.subr.mxu0 0.0
    %1190 = vmatpush1.msra.mxu0 0.0
    %1191 = vmatprep.subr.mxu0 0.0
    %1192 = vmatpush1.msra.mxu0 0.0
    %1193 = vmatprep.subr.mxu0 0.0
    %1194 = vmatpush1.msra.mxu0 0.0
    %1195 = vmatprep.subr.mxu0 0.0
    %1196 = vmatpush1.msra.mxu0 0.0
    %1197 = vmatprep.subr.mxu0 0.0
    %1198 = vmatpush1.msra.mxu0 0.0
    %1199 = vmatprep.subr.mxu0 0.0
    %1200 = vmatpush1.msra.mxu0 0.0
    %1201 = vmatprep.subr.mxu0 0.0
    %1202 = vmatpush1.msra.mxu0 0.0
    %1203 = vmatprep.subr.mxu0 0.0
    %1204 = vmatpush1.msra.mxu0 0.0
    %1205 = vmatprep.subr.mxu0 0.0
    %1206 = vmatpush1.msra.mxu0 0.0
    %1207 = vmatprep.subr.mxu0 0.0
    %1208 = vmatpush1.msra.mxu0 0.0
    %1209 = vmatprep.subr.mxu0 0.0
    %1210 = vmatpush1.msra.mxu0 0.0
    %1211 = vmatprep.subr.mxu0 0.0
    %1212 = vmatpush1.msra.mxu0 0.0
    %1213 = vmatprep.subr.mxu0 0.0
    %1214 = vmatpush1.msra.mxu0 0.0
    %1215 = vmatprep.subr.mxu0 0.0
    %1216 = vmatpush1.msra.mxu0 0.0
    %1217 = vmatprep.subr.mxu0 0.0
    %1218 = vmatpush1.msra.mxu0 0.0
    %1219 = vmatprep.subr.mxu0 0.0
    %1220 = vmatpush1.msra.mxu0 0.0
    %1221 = vmatprep.subr.mxu0 0.0
    %1222 = vmatpush1.msra.mxu0 0.0
    %1223 = vmatprep.subr.mxu0 0.0
    %1224 = vmatpush1.msra.mxu0 0.0
    %1225 = vmatprep.mubr.f32.mxu0 0.0
    %1226 = vmatmul.mubr.f32.gmra.mrb[0].mxu0 %v1079
    %v1227 = vpop.f32.mrb[0].mxu0
    %v1228 = vadd.f32 0.0, %v1227
    %v1229 = vpop.f32.mrb[0].mxu0
    %v1230 = vadd.f32 0.0, %v1229
    %1231 = vmatprep.mubr.f32.mxu0 0.0
    %1232 = vmatmul.mubr.f32.gmra.mrb[0].mxu0 %v1082
    %v1233 = vpop.f32.mrb[0].mxu0
    %v1234 = vadd.f32 0.0, %v1233
    %v1235 = vpop.f32.mrb[0].mxu0
    %v1236 = vadd.f32 0.0, %v1235
    %1237 = vdwg.mxu0
    %v1238 = vadd.f32 %v1070, %v1151
    %v1239 = vadd.f32 %v1071, %v1153
    %v1240 = vadd.f32 %v1072, %v1228
    %v1241 = vadd.f32 %v1073, %v1230
    %v1242 = vadd.f32 %v1074, %v1157
    %v1243 = vadd.f32 %v1075, %v1159
    %v1244 = vadd.f32 %v1076, %v1234
    %v1245 = vadd.f32 %v1077, %v1236
    %v1246 = vxor.u32 %v1238, 2147483648
    %v1247 = vxor.u32 %v1242, 2147483648
    %v1248 = vmul.f32 %v1246, 1.442695
    %v1249 = vpow.pop %v1248
    %v1250 = vmul.f32 %v1247, 1.442695
    %v1251 = vpow.pop %v1250
    %v1252 = vadd.f32 %v1249, 1.0
    %v1253 = vadd.f32 %v1251, 1.0
    %v1254 = vrcp.pop %v1252
    %v1255 = vmul.f32 1.0, %v1254
    %v1256 = vrcp.pop %v1253
    %v1257 = vmul.f32 1.0, %v1256
    %v1258 = vxor.u32 %v1239, 2147483648
    %v1259 = vxor.u32 %v1243, 2147483648
    %v1260 = vmul.f32 %v1258, 1.442695
    %v1261 = vpow.pop %v1260
    %v1262 = vmul.f32 %v1259, 1.442695
    %v1263 = vpow.pop %v1262
    %v1264 = vadd.f32 %v1261, 1.0
    %v1265 = vadd.f32 %v1263, 1.0
    %v1266 = vrcp.pop %v1264
    %v1267 = vmul.f32 1.0, %v1266
    %v1268 = vrcp.pop %v1265
    %v1269 = vmul.f32 1.0, %v1268
    %v1270 = vtanh.pop %v1240
    %v1271 = vtanh.pop %v1244
    %v1272 = vxor.u32 %v1241, 2147483648
    %v1273 = vxor.u32 %v1245, 2147483648
    %v1274 = vmul.f32 %v1272, 1.442695
    %v1275 = vpow.pop %v1274
    %v1276 = vmul.f32 %v1273, 1.442695
    %v1277 = vpow.pop %v1276
    %v1278 = vadd.f32 %v1275, 1.0
    %v1279 = vadd.f32 %v1277, 1.0
    %v1280 = vrcp.pop %v1278
    %v1281 = vmul.f32 1.0, %v1280
    %v1282 = vrcp.pop %v1279
    %v1283 = vmul.f32 1.0, %v1282
    %v1284 = vmul.f32 %v1267, %v1048
    %v1285 = vmul.f32 %v1269, %v1049
    %v1286 = vmul.f32 %v1255, %v1270
    %v1287 = vmul.f32 %v1257, %v1271
    %v1288 = vadd.f32 %v1284, %v1286
    %v1289 = vadd.f32 %v1285, %v1287
    %v1290 = vtanh.pop %v1288
    %v1291 = vtanh.pop %v1289
    %v1292 = vmul.f32 %v1281, %v1290
    %v1293 = vmul.f32 %v1283, %v1291
    %v1294 = vld [vmem:[#allocation2 + $0x24] ss:$0 sm:$0xff]
    %v1295 = vld [vmem:[#allocation2 + $0x25] ss:$0 sm:$0xff]
    %v1296 = vmul.f32 %v1292, %v1294
    %v1297 = vmul.f32 %v1293, %v1294
    %v1298 = vsel %vm107, %v1296, 0.0
    %1299 = vadd.xlane.f32.xlu0 %v1298
    %v1300 = vpop.xlane.xlu0 %1299
    %vm1301 = vcmask 74752
    %v1302 = vsel %vm1301, %v1297, 0.0
    %1303 = vadd.xlane.f32.xlu0 %v1302
    %v1304 = vpop.xlane.xlu0 %1303
    %v1305 = vadd.f32 %v1300, %v1295
    %v1306 = vadd.f32 %v1304, %v1295
    %vm1307 = vcmask 7168
    %1308 = vst.msk [vmem:[%s2] sm:$0xff] %vm1307, %v1305
    %vm1309 = vcmask 1024
    %1310 = vst.msk [vmem:[%s2 + $0x8] sm:$0x3] %vm1309, %v1306
    // Predicated region
    $region14: #{tpu_custom_call.1} parent=1 // pred_check
      _
    $region15: #{tpu_custom_call.1} parent=1 // pred_check_branch
      %1312 = sbr.rel (0) target = $region17
    $region16: #{tpu_custom_call.1} parent=1 // pred_region
      _
    $region17: #{tpu_custom_call.1} parent=1 // pred_fallthru
      _
    // Predicated region
    $region18: #{tpu_custom_call.1} parent=1 // pred_check
      _
    $region19: #{tpu_custom_call.1} parent=1 // pred_check_branch
      %1314 = sbr.rel (0) target = $region21
    $region20: #{tpu_custom_call.1} parent=1 // pred_region
      _
    $region21: #{tpu_custom_call.1} parent=1 // pred_fallthru
      _
    %1315 = vsyncpa [#allocation3], 1

</llo_original>
